<compile_context>
chip_gen: v5e
topology: v5e:2x2
jax: 0.10.0
libtpu: 0.0.40
codegen_flags: <defaults>
</compile_context>

<pallas_src>
import functools

import jax
import jax.numpy as jnp
from jax import lax
from jax.experimental import pallas as pl
from jax.experimental.pallas import tpu as pltpu


def _round_up(x, m):
    return ((x + m - 1) // m) * m


def _conv_bn_kernel(p_ref, w_ref, shift_ref, o_ref):
    # p_ref:     (Kp, TM)    bf16 im2col patch tile (lane axis = spatial positions)
    # w_ref:     (Cout, Kp)  bf16 conv weights with BN scale folded in
    # shift_ref: (Cout, 1)   f32  BN shift (beta - mean * scale)
    # o_ref:     (Cout, TM)  f32  output tile (lane-dense store)
    acc = jnp.dot(w_ref[...], p_ref[...], preferred_element_type=jnp.float32)
    o_ref[...] = (acc + shift_ref[...]).astype(o_ref.dtype)


@functools.partial(jax.jit, static_argnames=("stride",))
def firstconv3x3_forward(x_nchw, w_oihw, gamma, beta, run_mean, run_var, *, stride):
    """Conv2d(3x3, stride, pad=1, no bias) + BatchNorm2d (inference stats)."""
    eps = 1e-5
    N, Cin, H, W = x_nchw.shape
    Cout = w_oihw.shape[0]
    HO = (H + 2 - 3) // stride + 1
    WO = (W + 2 - 3) // stride + 1
    K = 9 * Cin
    Mn = HO * WO

    # ---- glue (one XLA fusion): bf16 cast + pad + strided taps + stack, from NCHW ----
    xp = jnp.pad(x_nchw.astype(jnp.bfloat16), ((0, 0), (0, 0), (1, 1), (1, 1)))
    taps = [xp[:, :, kh:kh + stride * HO:stride, kw:kw + stride * WO:stride]
            for kh in range(3) for kw in range(3)]              # each (N, Cin, HO, WO)
    patches = jnp.stack(taps, axis=2).reshape(N, K, Mn)          # (N, Cin*9, HO*WO) bf16

    # ---- fold BN: scale into weights (single rounding); keep only the shift add ----
    scale = gamma / jnp.sqrt(run_var + eps)                      # (Cout,)
    shift = (beta - run_mean * scale).astype(jnp.float32).reshape(Cout, 1)
    w_mat = w_oihw.reshape(Cout, K) * scale[:, None]

    # ---- pad K to bf16 sublane packing (27 -> 32); pad M only to a lane multiple ----
    Kp = _round_up(K, 16)
    Mp = _round_up(Mn, 128)                                      # 0 pad for 224x224
    if Kp != K or Mp != Mn:
        patches = jnp.pad(patches, ((0, 0), (0, Kp - K), (0, Mp - Mn)))
    if Kp != K:
        w_mat = jnp.pad(w_mat, ((0, 0), (0, Kp - K)))
    w_mat = w_mat.astype(jnp.bfloat16)

    # ---- tile the spatial (lane) axis: big, evenly split tiles capped at 8192 ----
    TM_CAP = 8192                      # sweep 4096-8192; keep toward 4096 on v5e
    num_m_tiles = max(1, pl.cdiv(Mn, TM_CAP))
    if N == 1 and num_m_tiles == 1 and Mn > 128:
        num_m_tiles = 2                # guarantee >= 2 grid steps for dual-TC chips
    TM = _round_up(pl.cdiv(Mn, num_m_tiles), 128)
    num_m_tiles = pl.cdiv(Mn, TM)

    out = pl.pallas_call(
        _conv_bn_kernel,
        out_shape=jax.ShapeDtypeStruct((N, Cout, Mn), jnp.float32),
        grid_spec=pltpu.PrefetchScalarGridSpec(
            num_scalar_prefetch=0,
            grid=(N, num_m_tiles),
            in_specs=[
                pl.BlockSpec((None, Kp, TM), lambda n, i: (n, 0, i)),   # patches
                pl.BlockSpec((Cout, Kp), lambda n, i: (0, 0)),          # folded weights
                pl.BlockSpec((Cout, 1), lambda n, i: (0, 0)),           # BN shift
            ],
            out_specs=pl.BlockSpec((None, Cout, TM), lambda n, i: (n, 0, i)),
        ),
        compiler_params=pltpu.CompilerParams(
            dimension_semantics=("parallel", "parallel")),
    )(patches, w_mat, shift)

    # (N, Cout, HO*WO) -> NCHW directly; ragged tiles were masked on writeback.
    return out.reshape(N, Cout, HO, WO)


def _reference_f32(x_nchw, w_oihw, gamma, beta, run_mean, run_var, stride):
    eps = 1e-5
    y = lax.conv_general_dilated(
        x_nchw, w_oihw, window_strides=(stride, stride),
        padding=((1, 1), (1, 1)),
        dimension_numbers=("NCHW", "OIHW", "NCHW"))
    scale = gamma / jnp.sqrt(run_var + eps)
    shift = beta - run_mean * scale
    return y * scale[None, :, None, None] + shift[None, :, None, None]


def _reference_bf16(x_nchw, w_oihw, gamma, beta, run_mean, run_var, stride):
    # Same bf16 rounding of operands as the kernel, f32 accumulation.
    eps = 1e-5
    scale = gamma / jnp.sqrt(run_var + eps)
    shift = beta - run_mean * scale
    w_folded = (w_oihw * scale[:, None, None, None]).astype(jnp.bfloat16)
    y = lax.conv_general_dilated(
        x_nchw.astype(jnp.bfloat16), w_folded,
        window_strides=(stride, stride), padding=((1, 1), (1, 1)),
        dimension_numbers=("NCHW", "OIHW", "NCHW"),
        preferred_element_type=jnp.float32)
    return y + shift[None, :, None, None]


if __name__ == "__main__":
    # ReActNet first conv: inp=3 -> oup=32, stride=2
    N, Cin, H, W = 2, 3, 16, 16
    Cout, stride = 32, 2

    key = jax.random.PRNGKey(0)
    kx, kw, kg, kb, km, kv = jax.random.split(key, 6)
    x = jax.random.normal(kx, (N, Cin, H, W), dtype=jnp.float32)
    w = jax.random.normal(kw, (Cout, Cin, 3, 3), dtype=jnp.float32) * 0.1
    gamma = 1.0 + 0.1 * jax.random.normal(kg, (Cout,), dtype=jnp.float32)
    beta = 0.1 * jax.random.normal(kb, (Cout,), dtype=jnp.float32)
    run_mean = 0.1 * jax.random.normal(km, (Cout,), dtype=jnp.float32)
    run_var = jax.random.uniform(kv, (Cout,), dtype=jnp.float32,
                                 minval=0.5, maxval=1.5)

    out = firstconv3x3_forward(x, w, gamma, beta, run_mean, run_var, stride=stride)
    out = jax.block_until_ready(out)

    HO = (H + 2 - 3) // stride + 1
    WO = (W + 2 - 3) // stride + 1
    assert out.shape == (N, Cout, HO, WO), out.shape

    # Tight check vs. a reference using the same bf16-rounded operands (f32 accum).
    ref_b = _reference_bf16(x, w, gamma, beta, run_mean, run_var, stride)
    assert jnp.allclose(out, ref_b, atol=5e-3, rtol=5e-3), float(
        jnp.max(jnp.abs(out - ref_b)))

    # Semantic check vs. the full-f32 conv+BN reference (bf16 input rounding tol).
    ref_f = _reference_f32(x, w, gamma, beta, run_mean, run_var, stride)
    assert jnp.allclose(out, ref_f, atol=3e-2, rtol=3e-2), float(
        jnp.max(jnp.abs(out - ref_f)))

    print("KERNEL_OK")
</pallas_src>

<mosaic_0001>
module attributes {stable_mosaic.version = 11 : i64} {
  func.func @_conv_bn_kernel(%arg0: i32, %arg1: i32, %arg2: memref<1x32x128xbf16, #tpu.memory_space<vmem>>, %arg3: memref<32x32xbf16, #tpu.memory_space<vmem>>, %arg4: memref<32x1xf32, #tpu.memory_space<vmem>>, %arg5: memref<1x32x128xf32, #tpu.memory_space<vmem>>) attributes {dimension_semantics = [#tpu.dimension_semantics<parallel>, #tpu.dimension_semantics<parallel>], iteration_bounds = array<i64: 2, 1>, scalar_prefetch = 0 : i64, scratch_operands = 0 : i64, tpu.core_type = #tpu.core_type<tc>, window_params = [{transform_indices = @transform_0, window_bounds = array<i64: 1, 32, 128>}, {pipeline_mode = #tpu.pipeline_mode<synchronous>, transform_indices = @transform_1, window_bounds = array<i64: 32, 32>}, {pipeline_mode = #tpu.pipeline_mode<synchronous>, transform_indices = @transform_2, window_bounds = array<i64: 32, 1>}, {transform_indices = @transform_3, window_bounds = array<i64: 1, 32, 128>}]} {
    %c0 = arith.constant 0 : index
    %c0_0 = arith.constant 0 : index
    %0 = vector.load %arg3[%c0, %c0_0] : memref<32x32xbf16, #tpu.memory_space<vmem>>, vector<32x32xbf16>
    %c0_1 = arith.constant 0 : index
    %c0_2 = arith.constant 0 : index
    %c0_3 = arith.constant 0 : index
    %1 = vector.load %arg2[%c0_1, %c0_2, %c0_3] : memref<1x32x128xbf16, #tpu.memory_space<vmem>>, vector<1x32x128xbf16>
    %2 = vector.shape_cast %1 : vector<1x32x128xbf16> to vector<32x128xbf16>
    %cst = arith.constant dense<0.000000e+00> : vector<32x128xf32>
    %3 = tpu.matmul %0, %2, %cst {dimension_numbers = #tpu.dot_dimension_numbers<[1], [0], [0], [1], [0, 0, 1, 1], [], []>} : vector<32x32xbf16>, vector<32x128xbf16>, vector<32x128xf32> -> vector<32x128xf32>
    %c0_4 = arith.constant 0 : index
    %c0_5 = arith.constant 0 : index
    %4 = vector.load %arg4[%c0_4, %c0_5] : memref<32x1xf32, #tpu.memory_space<vmem>>, vector<32x1xf32>
    %5 = vector.broadcast %4 : vector<32x1xf32> to vector<32x128xf32>
    %6 = arith.addf %3, %5 : vector<32x128xf32>
    %c0_6 = arith.constant 0 : index
    %c0_7 = arith.constant 0 : index
    %c0_8 = arith.constant 0 : index
    %7 = vector.load %arg5[%c0_6, %c0_7, %c0_8] : memref<1x32x128xf32, #tpu.memory_space<vmem>>, vector<1x32x128xf32>
    %8 = vector.shape_cast %7 : vector<1x32x128xf32> to vector<32x128xf32>
    %9 = vector.shape_cast %6 : vector<32x128xf32> to vector<1x32x128xf32>
    tpu.vector_store %arg5[%c0_6, %c0_7, %c0_8], %9 {strides = array<i32>} : memref<1x32x128xf32, #tpu.memory_space<vmem>>, vector<1x32x128xf32>,
    return
  }
  func.func @transform_0(%arg0: i32, %arg1: i32) -> (i32, i32, i32) {
    %c0_i32 = arith.constant 0 : i32
    %c0_i32_0 = arith.constant 0 : i32
    return %arg0, %c0_i32, %arg1 : i32, i32, i32
  }
  func.func @transform_1(%arg0: i32, %arg1: i32) -> (i32, i32) {
    %c0_i32 = arith.constant 0 : i32
    %c0_i32_0 = arith.constant 0 : i32
    %c0_i32_1 = arith.constant 0 : i32
    return %c0_i32, %c0_i32_0 : i32, i32
  }
  func.func @transform_2(%arg0: i32, %arg1: i32) -> (i32, i32) {
    %c0_i32 = arith.constant 0 : i32
    %c0_i32_0 = arith.constant 0 : i32
    %c0_i32_1 = arith.constant 0 : i32
    return %c0_i32, %c0_i32_0 : i32, i32
  }
  func.func @transform_3(%arg0: i32, %arg1: i32) -> (i32, i32, i32) {
    %c0_i32 = arith.constant 0 : i32
    %c0_i32_0 = arith.constant 0 : i32
    return %arg0, %c0_i32, %arg1 : i32, i32, i32
  }
}

</mosaic_0001>

<llo_original>
// kernel: firstconv3x3_forward.1
$region0: #{firstconv3x3_forward.1}
  #allocation0 [shape = 'u32[]', space=smem, size = 0x4, offset = 0x4, fixed_abs, tag = 'smem constant byte address 0x4 - core index']
  #allocation1 [shape = 'u32[72,128]{1,0:T(1,128)}', space=vmem, size = 0x9000, scoped, tag = 'internal scratch']
  %s0 = inlined_call_operand.vmem [shape: bf16[2,32,128], index: 0, kind: input, shape index: {}]
  %s1 = inlined_call_operand.vmem [shape: bf16[32,32], index: 1, kind: input, shape index: {}]
  %s2 = inlined_call_operand.vmem [shape: f32[32,1], index: 2, kind: input, shape index: {}]
  %s3 = inlined_call_operand.vmem [shape: f32[2,32,64], index: 3, kind: output, shape index: {}]
  %s4 = sld [smem:[#allocation0]]
  $region45: #{firstconv3x3_forward.1} parent=0
    _
  %s6 = ssub.s32 1, %s4
  %s7 = scalar_select 0, %s6, %s4
  loop: start=0, step=1, limit=4
  $region2: #{firstconv3x3_forward.1} parent=0 // loop_pre_header
    _
  $region3: #{firstconv3x3_forward.1} parent=0 // loop_header
    %s9 = sphi 0, %s13
    %p10 = scmp.ge.s32.totalorder %s9, 4
    %s16 = sphi 0, %s28
    %s17 = sphi 0, %s24
    %s18 = sphi 0, %s16
    %s19 = sphi 0, %s17
    %s20 = sphi 0, %s18
    %s21 = sphi 0, %s19
    %s33 = sphi 0, %s35
    %s36 = sphi 0, %s33
    %s37 = sphi 0, %s36
    %s53 = sphi 0, %s37
    %s57 = sphi 0, %s57
    %s59 = sphi 0, %s57
    %s60 = sphi 0, %s59
    %s74 = sphi 0, %s60
    %s78 = sphi 0, %s78
    %s80 = sphi 0, %s78
    %s81 = sphi 0, %s80
    %s95 = sphi 0, %s81
    %s103 = sphi 0, %s105
    %s106 = sphi 0, %s103
    %s107 = sphi 0, %s106
    %s123 = sphi 0, %s107
  $region4: #{firstconv3x3_forward.1} parent=0 // loop_header_branch
    %12 = sbr.rel (%p10) target = $region8
  $region5: #{firstconv3x3_forward.1} parent=0 // loop_body
    %s14 = ssub.s32 %s9, 1
    %s15 = ssub.s32 %s9, 2
    %s22 = sadd.s32 1, %s17
    %p23 = scmp.ge.s32.totalorder %s22, 1
    %s24 = scalar_select %p23, 0, %s22
    %s25 = sadd.s32 1, %s16
    %s26 = scalar_select %p23, %s25, %s16
    %p27 = scmp.ge.s32.totalorder %s26, 2
    %s28 = scalar_select %p27, 0, %s26
    %s29 = ssub.s32 %s16, %s28
    %s30 = ssub.s32 %s17, %s24
    %s31 = sor.u32 %s29, %s30
    %p32 = scmp.eq.s32.totalorder %s31, 0
    %s34 = sadd.s32 %s33, 1
    %s35 = scalar_select %p32, %s33, %s34
    %p38 = pneg %p32
    %p39 = scmp.eq.s32.totalorder %s9, 1
    %p40 = por %p38, %p39
    %p41 = scmp.ne.s32.totalorder %s33, %s36
    %p42 = scmp.eq.s32.totalorder %s9, 0
    %p43 = por %p41, %p42
    %p44 = scmp.ne.s32.totalorder %s33, %s36
    %p45 = scmp.eq.s32.totalorder %s14, 1
    %p46 = por %p44, %p45
    %p47 = scmp.ne.s32.totalorder %s36, %s37
    %p48 = scmp.eq.s32.totalorder %s14, 0
    %p49 = por %p47, %p48
    %p50 = scmp.ne.s32.totalorder %s36, %s37
    %p51 = scmp.eq.s32.totalorder %s15, 1
    %p52 = por %p50, %p51
    %p54 = scmp.ne.s32.totalorder %s37, %s53
    %p55 = scmp.eq.s32.totalorder %s15, 0
    %p56 = por %p54, %p55
    %s58 = sadd.s32 %s57, 1
    %p61 = scmp.eq.s32.totalorder %s9, 1
    %p62 = scmp.ne.s32.totalorder %s57, %s59
    %p63 = scmp.eq.s32.totalorder %s9, 0
    %p64 = por %p62, %p63
    %p65 = scmp.ne.s32.totalorder %s57, %s59
    %p66 = scmp.eq.s32.totalorder %s14, 1
    %p67 = por %p65, %p66
    %p68 = scmp.ne.s32.totalorder %s59, %s60
    %p69 = scmp.eq.s32.totalorder %s14, 0
    %p70 = por %p68, %p69
    %p71 = scmp.ne.s32.totalorder %s59, %s60
    %p72 = scmp.eq.s32.totalorder %s15, 1
    %p73 = por %p71, %p72
    %p75 = scmp.ne.s32.totalorder %s60, %s74
    %p76 = scmp.eq.s32.totalorder %s15, 0
    %p77 = por %p75, %p76
    %s79 = sadd.s32 %s78, 1
    %p82 = scmp.eq.s32.totalorder %s9, 1
    %p83 = scmp.ne.s32.totalorder %s78, %s80
    %p84 = scmp.eq.s32.totalorder %s9, 0
    %p85 = por %p83, %p84
    %p86 = scmp.ne.s32.totalorder %s78, %s80
    %p87 = scmp.eq.s32.totalorder %s14, 1
    %p88 = por %p86, %p87
    %p89 = scmp.ne.s32.totalorder %s80, %s81
    %p90 = scmp.eq.s32.totalorder %s14, 0
    %p91 = por %p89, %p90
    %p92 = scmp.ne.s32.totalorder %s80, %s81
    %p93 = scmp.eq.s32.totalorder %s15, 1
    %p94 = por %p92, %p93
    %p96 = scmp.ne.s32.totalorder %s81, %s95
    %p97 = scmp.eq.s32.totalorder %s15, 0
    %p98 = por %p96, %p97
    %s99 = ssub.s32 %s16, %s28
    %s100 = ssub.s32 %s17, %s24
    %s101 = sor.u32 %s99, %s100
    %p102 = scmp.eq.s32.totalorder %s101, 0
    %s104 = sadd.s32 %s103, 1
    %s105 = scalar_select %p102, %s103, %s104
    %p108 = pneg %p102
    %p109 = scmp.eq.s32.totalorder %s9, 1
    %p110 = por %p108, %p109
    %p111 = scmp.ne.s32.totalorder %s103, %s106
    %p112 = scmp.eq.s32.totalorder %s9, 0
    %p113 = por %p111, %p112
    %p114 = scmp.ne.s32.totalorder %s103, %s106
    %p115 = scmp.eq.s32.totalorder %s14, 1
    %p116 = por %p114, %p115
    %p117 = scmp.ne.s32.totalorder %s106, %s107
    %p118 = scmp.eq.s32.totalorder %s14, 0
    %p119 = por %p117, %p118
    %p120 = scmp.ne.s32.totalorder %s106, %s107
    %p121 = scmp.eq.s32.totalorder %s15, 1
    %p122 = por %p120, %p121
    %p124 = scmp.ne.s32.totalorder %s107, %s123
    %p125 = scmp.eq.s32.totalorder %s15, 0
    %p126 = por %p124, %p125
    %p127 = scmp.le.s32.totalorder 1, %s9
    %p128 = scmp.lt.s32.totalorder %s9, 3
    %p129 = pnand %p127, %p128
    %p130 = pneg %p129
    // Predicated region
    $region9: #{firstconv3x3_forward.1} parent=5 // pred_check
      _
    $region10: #{firstconv3x3_forward.1} parent=5 // pred_check_branch
      %132 = sbr.rel (%p129) target = $region12
    $region11: #{firstconv3x3_forward.1} parent=5 // pred_region
      %s133 = ssub.s32 %s9, 1
      // Predicated region
      $region13: #{firstconv3x3_forward.1} parent=11 // pred_check
        %p134 = pneg %p70
      $region14: #{firstconv3x3_forward.1} parent=11 // pred_check_branch
        %136 = sbr.rel (%p134) target = $region16
      $region15: #{firstconv3x3_forward.1} parent=11 // pred_region
        _
      $region16: #{firstconv3x3_forward.1} parent=11 // pred_fallthru
        _
      // Predicated region
      $region17: #{firstconv3x3_forward.1} parent=11 // pred_check
        %p137 = pneg %p91
      $region18: #{firstconv3x3_forward.1} parent=11 // pred_check_branch
        %139 = sbr.rel (%p137) target = $region20
      $region19: #{firstconv3x3_forward.1} parent=11 // pred_region
        _
      $region20: #{firstconv3x3_forward.1} parent=11 // pred_fallthru
        _
    $region12: #{firstconv3x3_forward.1} parent=5 // pred_fallthru
      _
    %p140 = scmp.lt.s32.totalorder %s9, 2
    // Predicated region
    $region21: #{firstconv3x3_forward.1} parent=5 // pred_check
      %p141 = pneg %p140
    $region22: #{firstconv3x3_forward.1} parent=5 // pred_check_branch
      %143 = sbr.rel (%p141) target = $region24
    $region23: #{firstconv3x3_forward.1} parent=5 // pred_region
      // Predicated region
      $region25: #{firstconv3x3_forward.1} parent=23 // pred_check
        %p144 = pneg %p43
      $region26: #{firstconv3x3_forward.1} parent=23 // pred_check_branch
        %146 = sbr.rel (%p144) target = $region28
      $region27: #{firstconv3x3_forward.1} parent=23 // pred_region
        %p147 = scmp.lt.s32.totalorder %s16, 1
        %s148 = scalar_select %p147, %s16, 1
        %p149 = scmp.lt.s32.totalorder %s17, 0
        %s150 = scalar_select %p149, %s17, 0
        %s151 = smul.addr %s148, 4
        %s152 = sadd.s32 %s150, %s151
        %s153 = smul.addr %s152, 4
        %s154 = scalar_lea.vmem %s0, %s153
      $region28: #{firstconv3x3_forward.1} parent=23 // pred_fallthru
        _
    $region24: #{firstconv3x3_forward.1} parent=5 // pred_fallthru
      _
    %p155 = scmp.le.s32.totalorder 1, %s9
    %p156 = scmp.lt.s32.totalorder %s9, 3
    %p157 = pnand %p155, %p156
    %p158 = pneg %p157
    // Predicated region
    $region29: #{firstconv3x3_forward.1} parent=5 // pred_check
      _
    $region30: #{firstconv3x3_forward.1} parent=5 // pred_check_branch
      %160 = sbr.rel (%p157) target = $region32
    $region31: #{firstconv3x3_forward.1} parent=5 // pred_region
      %s161 = ssub.s32 %s9, 1
      %p162 = scmp.lt.s32.totalorder %s18, 1
      %s163 = scalar_select %p162, %s18, 1
      %p164 = scmp.lt.s32.totalorder %s19, 0
      %s165 = scalar_select %p164, %s19, 0
      %s166 = smul.addr %s163, 4
      %s167 = sadd.s32 %s165, %s166
      %s168 = smul.addr %s167, 4
      %s169 = scalar_lea.vmem %s0, %s168
      %p170 = pneg %p49
      %p171 = pneg %p46
      %p172 = pneg %p70
      %p173 = pneg %p67
      %p174 = pneg %p91
      %p175 = pneg %p88
      %p176 = pneg %p119
      %p177 = pneg %p116
      %p178 = scmp.lt.s32.totalorder %s18, 1
      %s179 = scalar_select %p178, %s18, 1
      %p180 = scmp.lt.s32.totalorder %s19, 0
      %s181 = scalar_select %p180, %s19, 0
      %s182 = smul.addr %s179, 4
      %s183 = sadd.s32 %s181, %s182
      %s184 = smul.addr %s183, 8
      %s185 = scalar_lea.vmem %s3, %s184
      %p186 = scmp.lt.s32.totalorder %s18, 1
      %s187 = scalar_select %p186, %s18, 1
      %p188 = scmp.lt.s32.totalorder %s19, 0
      %s189 = scalar_select %p188, %s19, 0
      %s190 = smul.addr %s187, 4
      %s191 = sadd.s32 %s189, %s190
      %s192 = smul.addr %s191, 4
      %s193 = scalar_lea.vmem %s0, %s192
      %p194 = scmp.lt.s32.totalorder %s18, 1
      %s195 = scalar_select %p194, %s18, 1
      %p196 = scmp.lt.s32.totalorder %s19, 0
      %s197 = scalar_select %p196, %s19, 0
      %s198 = smul.addr %s195, 4
      %s199 = sadd.s32 %s197, %s198
      %s200 = smul.addr %s199, 8
      %s201 = scalar_lea.vmem %s3, %s200
      %v203 = vld [vmem:[%s1] sm:$0xf]
      %v204 = vld [vmem:[%s1 + $0x4] sm:$0xf]
      %v205 = vld [vmem:[%s1 + $0x8] sm:$0xf]
      %v206 = vld [vmem:[%s1 + $0xc] sm:$0xf]
      %v207 = vld [vmem:[%s193] sm:$0xf]
      %v208 = vld [vmem:[%s193 + $0x4] sm:$0xf]
      %v209 = vld [vmem:[%s193 + $0x8] sm:$0xf]
      %v210 = vld [vmem:[%s193 + $0xc] sm:$0xf]
      %v211 = vld [vmem:[%s2] sm:$0xff]
      %v212 = vld [vmem:[%s2 + $0x8] sm:$0xff]
      %v213 = vld [vmem:[%s2 + $0x10] sm:$0xff]
      %v214 = vld [vmem:[%s2 + $0x18] sm:$0xff]
      %216 = vset.pattern.permute.xlu0 0
      %217 = vperm.xlu0 %216, %v211
      %v218 = vpop.permute.xlu0 %217
      %221 = vset.pattern.permute.xlu0 0
      %222 = vperm.xlu0 %221, %v212
      %v223 = vpop.permute.xlu0 %222
      %226 = vset.pattern.permute.xlu0 0
      %227 = vperm.xlu0 %226, %v213
      %v228 = vpop.permute.xlu0 %227
      %231 = vset.pattern.permute.xlu0 0
      %232 = vperm.xlu0 %231, %v214
      %v233 = vpop.permute.xlu0 %232
      %v239 = vunpack.c.l.b16 %v203
      %v240 = vunpack.c.l.b16 %v204
      %v241 = vunpack.c.l.b16 %v205
      %v242 = vunpack.c.l.b16 %v206
      %v243 = vpack.c.b16 %v240, %v239
      %v244 = vpack.c.b16 %v242, %v241
      %v249 = vunpack.c.l.b16 %v207
      %v250 = vunpack.c.l.b16 %v208
      %v251 = vunpack.c.l.b16 %v209
      %v252 = vunpack.c.l.b16 %v210
      %v253 = vpack.c.b16 %v250, %v249
      %v254 = vpack.c.b16 %v252, %v251
      %vm257 = vcmask 261120
      %v259 = vsel %vm257, %v243, 0
      %v262 = vsel %vm257, %v244, 0
      %264 = vmatpush.bf16.msra.mxu0 0
      %265 = vmatpush.bf16.msra.mxu0 0
      %266 = vmatpush.bf16.msra.mxu0 0
      %267 = vmatpush.bf16.msra.mxu0 0
      %268 = vmatpush.bf16.msra.mxu0 0
      %269 = vmatpush.bf16.msra.mxu0 0
      %270 = vmatpush.bf16.msra.mxu0 %v254
      %271 = vmatpush.bf16.msra.mxu0 %v253
      %272 = vmatmul.bf16.gmra.mxu0 %v259
      %v273 = vpop.f32.mrf.mxu0
      %v274 = vadd.f32 %v218, %v273
      %v275 = vpop.f32.mrf.mxu0
      %v276 = vadd.f32 %v223, %v275
      %277 = vmatmul.bf16.gmra.mxu0 %v262
      %v278 = vpop.f32.mrf.mxu0
      %v279 = vadd.f32 %v228, %v278
      %v280 = vpop.f32.mrf.mxu0
      %v281 = vadd.f32 %v233, %v280
      %282 = vdwg.mxu0
      %283 = vst [vmem:[%s201] sm:$0xff] %v274
      %284 = vst [vmem:[%s201 + $0x8] sm:$0xff] %v276
      %285 = vst [vmem:[%s201 + $0x10] sm:$0xff] %v279
      %286 = vst [vmem:[%s201 + $0x18] sm:$0xff] %v281
      %p287 = scmp.lt.s32.totalorder %s18, 1
      %s288 = scalar_select %p287, %s18, 1
      %p289 = scmp.lt.s32.totalorder %s19, 0
      %s290 = scalar_select %p289, %s19, 0
      %s291 = smul.addr %s288, 4
      %s292 = sadd.s32 %s290, %s291
      %s293 = smul.addr %s292, 8
      %s294 = scalar_lea.vmem %s3, %s293
      // Predicated region
      $region33: #{firstconv3x3_forward.1} parent=31 // pred_check
        %p295 = pneg %p116
      $region34: #{firstconv3x3_forward.1} parent=31 // pred_check_branch
        %297 = sbr.rel (%p295) target = $region36
      $region35: #{firstconv3x3_forward.1} parent=31 // pred_region
        _
      $region36: #{firstconv3x3_forward.1} parent=31 // pred_fallthru
        _
    $region32: #{firstconv3x3_forward.1} parent=5 // pred_fallthru
      _
    %p298 = scmp.le.s32.totalorder 2, %s9
    // Predicated region
    $region37: #{firstconv3x3_forward.1} parent=5 // pred_check
      %p299 = pneg %p298
    $region38: #{firstconv3x3_forward.1} parent=5 // pred_check_branch
      %301 = sbr.rel (%p299) target = $region40
    $region39: #{firstconv3x3_forward.1} parent=5 // pred_region
      %s302 = ssub.s32 %s9, 2
      // Predicated region
      $region41: #{firstconv3x3_forward.1} parent=39 // pred_check
        %p303 = pneg %p122
      $region42: #{firstconv3x3_forward.1} parent=39 // pred_check_branch
        %305 = sbr.rel (%p303) target = $region44
      $region43: #{firstconv3x3_forward.1} parent=39 // pred_region
        %p306 = scmp.lt.s32.totalorder %s20, 1
        %s307 = scalar_select %p306, %s20, 1
        %p308 = scmp.lt.s32.totalorder %s21, 0
        %s309 = scalar_select %p308, %s21, 0
        %s310 = smul.addr %s307, 4
        %s311 = sadd.s32 %s309, %s310
        %s312 = smul.addr %s311, 8
        %s313 = scalar_lea.vmem %s3, %s312
      $region44: #{firstconv3x3_forward.1} parent=39 // pred_fallthru
        _
    $region40: #{firstconv3x3_forward.1} parent=5 // pred_fallthru
      _
  $region6: #{firstconv3x3_forward.1} parent=0 // loop_footer
    %s13 = sadd.s32 1, %s9
  $region7: #{firstconv3x3_forward.1} parent=0 // loop_footer_branch
    %8 = sbr.rel target = $region3
  $region8: #{firstconv3x3_forward.1} parent=0 // loop_exit
    _

</llo_original>
